<compile_context>
chip_gen: v6e
topology: v6e:2x2x1
jax: 0.10.0
libtpu: 0.0.40
codegen_flags: <defaults>
</compile_context>

<pallas_src>
import jax
import jax.numpy as jnp
from jax.experimental import pallas as pl
from jax.experimental.pallas import tpu as pltpu

NUM_EMBEDDINGS = 64
EMBEDDING_DIM = 32
PADDING_IDX = 0


def embedding_bag_kernel(hashes_ref, weights_ref, table_ref, out_ref):
    # hashes_ref  : (L, TB) int32    (lane-dense: batch on the lane axis)
    # weights_ref : (L, TB) float32
    # table_ref   : (D, N)  float32  (pre-transposed embedding table)
    # out_ref     : (D, TB) float32  (lane-dense output block)
    hashes = hashes_ref[...]                       # (L, TB)
    weights = weights_ref[...]                     # (L, TB)
    bag, tb = hashes.shape
    n = table_ref.shape[1]

    # EmbeddingBag padding semantics: zero the per-sample weight wherever the
    # index equals padding_idx (independent of the table row contents).
    weights = jnp.where(hashes != PADDING_IDX, weights, jnp.zeros_like(weights))

    # Sublane-axis vocab iota, built ONCE (hoisted out of the bag loop): (N, TB).
    vocab_iota = jax.lax.broadcasted_iota(jnp.int32, (n, tb), 0)

    # Fused weighted one-hot scatter:
    #   scatter_t[v, b] = sum_l weights[l, b] * (hashes[l, b] == v)
    # Static unrolled loop over the small bag dimension; each iteration is a
    # sublane-broadcast of a (1, TB) row plus a VALU compare/select, and only
    # one (N, TB) mask is live at a time (accumulated immediately).
    scatter_t = jnp.zeros((n, tb), dtype=jnp.float32)
    for l in range(bag):
        h = hashes[l:l + 1, :]                     # (1, TB)
        w = weights[l:l + 1, :]                    # (1, TB)
        hit = vocab_iota == h                      # (N, TB) bool
        scatter_t = scatter_t + jnp.where(hit, w, 0.0)

    # (D, N) @ (N, TB) on the MXU: output lane axis = batch tile (dense store).
    out_ref[...] = jnp.dot(table_ref[...], scatter_t,
                           preferred_element_type=jnp.float32)


def _default_batch_tile(B: int) -> int:
    # Largest multiple-of-128 tile (<= 512) dividing B that leaves >= 2 grid
    # steps, so the "parallel" axis shards across v7x's 2 TensorCores while the
    # tile stays big enough to amortize the ~0.35us/step overhead on v5e/v6e.
    for tile in (512, 256, 128):
        if B % tile == 0 and B // tile >= 2:
            return tile
    return B  # small / odd batch: single full-batch step


def embedding_bag(hashes, weights, table, *, batch_tile=None):
    B, L = hashes.shape
    N, D = table.shape

    if batch_tile is None:
        batch_tile = _default_batch_tile(B)
    assert B % batch_tile == 0, "ragged batch unsupported: pad B"
    # Output/input block lane dim must be a multiple of 128 or the full axis.
    assert batch_tile == B or batch_tile % 128 == 0

    # Cheap XLA-side layout plumbing: lane-dense (L, B) inputs and (D, N) table.
    hashes_t = hashes.astype(jnp.int32).T          # (L, B)
    weights_t = weights.astype(jnp.float32).T      # (L, B)
    table_t = table.astype(jnp.float32).T          # (D, N)

    grid = (B // batch_tile,)
    flops = 2 * B * N * D + B * L * N              # MXU contraction + compares
    bytes_accessed = 4 * (B * L * 2 + N * D + B * D)

    out_t = pl.pallas_call(
        embedding_bag_kernel,
        out_shape=jax.ShapeDtypeStruct((D, B), jnp.float32),
        grid_spec=pl.GridSpec(
            grid=grid,
            in_specs=[
                pl.BlockSpec((L, batch_tile), lambda i: (0, i)),   # hashes (L, TB)
                pl.BlockSpec((L, batch_tile), lambda i: (0, i)),   # weights (L, TB)
                pl.BlockSpec((D, N), lambda i: (0, 0)),            # table_t, grid-invariant
            ],
            out_specs=pl.BlockSpec((D, batch_tile), lambda i: (0, i)),
        ),
        compiler_params=pltpu.CompilerParams(
            dimension_semantics=("parallel",),
        ),
        cost_estimate=pl.CostEstimate(
            flops=flops, transcendentals=0, bytes_accessed=bytes_accessed),
    )(hashes_t, weights_t, table_t)

    return out_t.T                                  # (B, D)


def reference(hashes, weights, table):
    w = jnp.where(hashes != PADDING_IDX, weights, 0.0)
    gathered = table[hashes]                        # (B, L, D)
    return jnp.sum(gathered * w[:, :, None], axis=1)


if __name__ == "__main__":
    key = jax.random.PRNGKey(0)
    k_tab, k_idx, k_w = jax.random.split(key, 3)

    B, L = 16, 8

    # Deterministic parameter init mirroring torch.nn.EmbeddingBag:
    # weight ~ N(0, 1), padding_idx row zeroed.
    table = jax.random.normal(k_tab, (NUM_EMBEDDINGS, EMBEDDING_DIM), dtype=jnp.float32)
    table = table.at[PADDING_IDX].set(0.0)

    hashes = jax.random.randint(k_idx, (B, L), 0, NUM_EMBEDDINGS, dtype=jnp.int32)
    weights = jax.random.uniform(k_w, (B, L), dtype=jnp.float32)

    out = embedding_bag(hashes, weights, table)
    out = jax.block_until_ready(out)

    ref = reference(hashes, weights, table)
    assert out.shape == (B, EMBEDDING_DIM)
    assert jnp.allclose(out, ref, atol=1e-5, rtol=1e-5)

    print("KERNEL_OK")
</pallas_src>

<mosaic_0001>
module attributes {stable_mosaic.version = 11 : i64} {
  func.func @embedding_bag_kernel(%arg0: i32, %arg1: memref<8x16xi32, #tpu.memory_space<vmem>>, %arg2: memref<8x16xf32, #tpu.memory_space<vmem>>, %arg3: memref<32x64xf32, #tpu.memory_space<vmem>>, %arg4: memref<32x16xf32, #tpu.memory_space<vmem>>) attributes {dimension_semantics = [#tpu.dimension_semantics<parallel>], iteration_bounds = array<i64: 1>, scalar_prefetch = 0 : i64, scratch_operands = 0 : i64, tpu.core_type = #tpu.core_type<tc>, window_params = [{transform_indices = @transform_0, window_bounds = array<i64: 8, 16>}, {transform_indices = @transform_1, window_bounds = array<i64: 8, 16>}, {pipeline_mode = #tpu.pipeline_mode<synchronous>, transform_indices = @transform_2, window_bounds = array<i64: 32, 64>}, {transform_indices = @transform_3, window_bounds = array<i64: 32, 16>}]} {
    %c0 = arith.constant 0 : index
    %c0_0 = arith.constant 0 : index
    %0 = vector.load %arg1[%c0, %c0_0] : memref<8x16xi32, #tpu.memory_space<vmem>>, vector<8x16xi32>
    %c0_1 = arith.constant 0 : index
    %c0_2 = arith.constant 0 : index
    %1 = vector.load %arg2[%c0_1, %c0_2] : memref<8x16xf32, #tpu.memory_space<vmem>>, vector<8x16xf32>
    %c0_i32 = arith.constant 0 : i32
    %2 = vector.broadcast %c0_i32 : i32 to vector<8x16xi32>
    %3 = arith.cmpi ne, %0, %2 : vector<8x16xi32>
    %cst = arith.constant 0.000000e+00 : f32
    %4 = vector.broadcast %cst : f32 to vector<8x16xf32>
    %5 = arith.select %3, %1, %4 : vector<8x16xi1>, vector<8x16xf32>
    %6 = tpu.iota {dimensions = array<i32: 0>} : vector<64x16xi32>
    %cst_3 = arith.constant 0.000000e+00 : f32
    %7 = vector.broadcast %cst_3 : f32 to vector<64x16xf32>
    %8 = vector.extract_strided_slice %0 {offsets = [0, 0], sizes = [1, 16], strides = [1, 1]} : vector<8x16xi32> to vector<1x16xi32>
    %9 = vector.extract_strided_slice %5 {offsets = [0, 0], sizes = [1, 16], strides = [1, 1]} : vector<8x16xf32> to vector<1x16xf32>
    %10 = vector.broadcast %8 : vector<1x16xi32> to vector<64x16xi32>
    %11 = arith.cmpi eq, %6, %10 : vector<64x16xi32>
    %cst_4 = arith.constant 0.000000e+00 : f32
    %12 = vector.shape_cast %9 : vector<1x16xf32> to vector<1x16xf32>
    %13 = vector.broadcast %12 : vector<1x16xf32> to vector<64x16xf32>
    %14 = vector.broadcast %cst_4 : f32 to vector<64x16xf32>
    %15 = arith.select %11, %13, %14 : vector<64x16xi1>, vector<64x16xf32>
    %16 = arith.addf %7, %15 : vector<64x16xf32>
    %17 = vector.extract_strided_slice %0 {offsets = [1, 0], sizes = [1, 16], strides = [1, 1]} : vector<8x16xi32> to vector<1x16xi32>
    %18 = vector.extract_strided_slice %5 {offsets = [1, 0], sizes = [1, 16], strides = [1, 1]} : vector<8x16xf32> to vector<1x16xf32>
    %19 = vector.broadcast %17 : vector<1x16xi32> to vector<64x16xi32>
    %20 = arith.cmpi eq, %6, %19 : vector<64x16xi32>
    %cst_5 = arith.constant 0.000000e+00 : f32
    %21 = vector.shape_cast %18 : vector<1x16xf32> to vector<1x16xf32>
    %22 = vector.broadcast %21 : vector<1x16xf32> to vector<64x16xf32>
    %23 = vector.broadcast %cst_5 : f32 to vector<64x16xf32>
    %24 = arith.select %20, %22, %23 : vector<64x16xi1>, vector<64x16xf32>
    %25 = arith.addf %16, %24 : vector<64x16xf32>
    %26 = vector.extract_strided_slice %0 {offsets = [2, 0], sizes = [1, 16], strides = [1, 1]} : vector<8x16xi32> to vector<1x16xi32>
    %27 = vector.extract_strided_slice %5 {offsets = [2, 0], sizes = [1, 16], strides = [1, 1]} : vector<8x16xf32> to vector<1x16xf32>
    %28 = vector.broadcast %26 : vector<1x16xi32> to vector<64x16xi32>
    %29 = arith.cmpi eq, %6, %28 : vector<64x16xi32>
    %cst_6 = arith.constant 0.000000e+00 : f32
    %30 = vector.shape_cast %27 : vector<1x16xf32> to vector<1x16xf32>
    %31 = vector.broadcast %30 : vector<1x16xf32> to vector<64x16xf32>
    %32 = vector.broadcast %cst_6 : f32 to vector<64x16xf32>
    %33 = arith.select %29, %31, %32 : vector<64x16xi1>, vector<64x16xf32>
    %34 = arith.addf %25, %33 : vector<64x16xf32>
    %35 = vector.extract_strided_slice %0 {offsets = [3, 0], sizes = [1, 16], strides = [1, 1]} : vector<8x16xi32> to vector<1x16xi32>
    %36 = vector.extract_strided_slice %5 {offsets = [3, 0], sizes = [1, 16], strides = [1, 1]} : vector<8x16xf32> to vector<1x16xf32>
    %37 = vector.broadcast %35 : vector<1x16xi32> to vector<64x16xi32>
    %38 = arith.cmpi eq, %6, %37 : vector<64x16xi32>
    %cst_7 = arith.constant 0.000000e+00 : f32
    %39 = vector.shape_cast %36 : vector<1x16xf32> to vector<1x16xf32>
    %40 = vector.broadcast %39 : vector<1x16xf32> to vector<64x16xf32>
    %41 = vector.broadcast %cst_7 : f32 to vector<64x16xf32>
    %42 = arith.select %38, %40, %41 : vector<64x16xi1>, vector<64x16xf32>
    %43 = arith.addf %34, %42 : vector<64x16xf32>
    %44 = vector.extract_strided_slice %0 {offsets = [4, 0], sizes = [1, 16], strides = [1, 1]} : vector<8x16xi32> to vector<1x16xi32>
    %45 = vector.extract_strided_slice %5 {offsets = [4, 0], sizes = [1, 16], strides = [1, 1]} : vector<8x16xf32> to vector<1x16xf32>
    %46 = vector.broadcast %44 : vector<1x16xi32> to vector<64x16xi32>
    %47 = arith.cmpi eq, %6, %46 : vector<64x16xi32>
    %cst_8 = arith.constant 0.000000e+00 : f32
    %48 = vector.shape_cast %45 : vector<1x16xf32> to vector<1x16xf32>
    %49 = vector.broadcast %48 : vector<1x16xf32> to vector<64x16xf32>
    %50 = vector.broadcast %cst_8 : f32 to vector<64x16xf32>
    %51 = arith.select %47, %49, %50 : vector<64x16xi1>, vector<64x16xf32>
    %52 = arith.addf %43, %51 : vector<64x16xf32>
    %53 = vector.extract_strided_slice %0 {offsets = [5, 0], sizes = [1, 16], strides = [1, 1]} : vector<8x16xi32> to vector<1x16xi32>
    %54 = vector.extract_strided_slice %5 {offsets = [5, 0], sizes = [1, 16], strides = [1, 1]} : vector<8x16xf32> to vector<1x16xf32>
    %55 = vector.broadcast %53 : vector<1x16xi32> to vector<64x16xi32>
    %56 = arith.cmpi eq, %6, %55 : vector<64x16xi32>
    %cst_9 = arith.constant 0.000000e+00 : f32
    %57 = vector.shape_cast %54 : vector<1x16xf32> to vector<1x16xf32>
    %58 = vector.broadcast %57 : vector<1x16xf32> to vector<64x16xf32>
    %59 = vector.broadcast %cst_9 : f32 to vector<64x16xf32>
    %60 = arith.select %56, %58, %59 : vector<64x16xi1>, vector<64x16xf32>
    %61 = arith.addf %52, %60 : vector<64x16xf32>
    %62 = vector.extract_strided_slice %0 {offsets = [6, 0], sizes = [1, 16], strides = [1, 1]} : vector<8x16xi32> to vector<1x16xi32>
    %63 = vector.extract_strided_slice %5 {offsets = [6, 0], sizes = [1, 16], strides = [1, 1]} : vector<8x16xf32> to vector<1x16xf32>
    %64 = vector.broadcast %62 : vector<1x16xi32> to vector<64x16xi32>
    %65 = arith.cmpi eq, %6, %64 : vector<64x16xi32>
    %cst_10 = arith.constant 0.000000e+00 : f32
    %66 = vector.shape_cast %63 : vector<1x16xf32> to vector<1x16xf32>
    %67 = vector.broadcast %66 : vector<1x16xf32> to vector<64x16xf32>
    %68 = vector.broadcast %cst_10 : f32 to vector<64x16xf32>
    %69 = arith.select %65, %67, %68 : vector<64x16xi1>, vector<64x16xf32>
    %70 = arith.addf %61, %69 : vector<64x16xf32>
    %71 = vector.extract_strided_slice %0 {offsets = [7, 0], sizes = [1, 16], strides = [1, 1]} : vector<8x16xi32> to vector<1x16xi32>
    %72 = vector.extract_strided_slice %5 {offsets = [7, 0], sizes = [1, 16], strides = [1, 1]} : vector<8x16xf32> to vector<1x16xf32>
    %73 = vector.broadcast %71 : vector<1x16xi32> to vector<64x16xi32>
    %74 = arith.cmpi eq, %6, %73 : vector<64x16xi32>
    %cst_11 = arith.constant 0.000000e+00 : f32
    %75 = vector.shape_cast %72 : vector<1x16xf32> to vector<1x16xf32>
    %76 = vector.broadcast %75 : vector<1x16xf32> to vector<64x16xf32>
    %77 = vector.broadcast %cst_11 : f32 to vector<64x16xf32>
    %78 = arith.select %74, %76, %77 : vector<64x16xi1>, vector<64x16xf32>
    %79 = arith.addf %70, %78 : vector<64x16xf32>
    %c0_12 = arith.constant 0 : index
    %c0_13 = arith.constant 0 : index
    %80 = vector.load %arg3[%c0_12, %c0_13] : memref<32x64xf32, #tpu.memory_space<vmem>>, vector<32x64xf32>
    %cst_14 = arith.constant dense<0.000000e+00> : vector<32x16xf32>
    %81 = tpu.matmul %80, %79, %cst_14 {dimension_numbers = #tpu.dot_dimension_numbers<[1], [0], [0], [1], [0, 0, 1, 1], [], []>} : vector<32x64xf32>, vector<64x16xf32>, vector<32x16xf32> -> vector<32x16xf32>
    %c0_15 = arith.constant 0 : index
    %c0_16 = arith.constant 0 : index
    %82 = vector.load %arg4[%c0_15, %c0_16] : memref<32x16xf32, #tpu.memory_space<vmem>>, vector<32x16xf32>
    tpu.vector_store %arg4[%c0_15, %c0_16], %81 {strides = array<i32>} : memref<32x16xf32, #tpu.memory_space<vmem>>, vector<32x16xf32>,
    return
  }
  func.func @transform_0(%arg0: i32) -> (i32, i32) {
    %c0_i32 = arith.constant 0 : i32
    %c0_i32_0 = arith.constant 0 : i32
    return %c0_i32, %arg0 : i32, i32
  }
  func.func @transform_1(%arg0: i32) -> (i32, i32) {
    %c0_i32 = arith.constant 0 : i32
    %c0_i32_0 = arith.constant 0 : i32
    return %c0_i32, %arg0 : i32, i32
  }
  func.func @transform_2(%arg0: i32) -> (i32, i32) {
    %c0_i32 = arith.constant 0 : i32
    %c0_i32_0 = arith.constant 0 : i32
    %c0_i32_1 = arith.constant 0 : i32
    return %c0_i32, %c0_i32_0 : i32, i32
  }
  func.func @transform_3(%arg0: i32) -> (i32, i32) {
    %c0_i32 = arith.constant 0 : i32
    %c0_i32_0 = arith.constant 0 : i32
    return %c0_i32, %arg0 : i32, i32
  }
}

</mosaic_0001>

<llo_original>
// kernel: tpu_custom_call.1
$region0: #{tpu_custom_call.1}
  #allocation0 [shape = 'u32[]', space=smem, size = 0x4, offset = 0x4, fixed_abs, tag = 'smem constant byte address 0x4 - core index']
  #allocation1 [shape = 'u32[144,128]{1,0:T(1,128)}', space=vmem, size = 0x12000, scoped, tag = 'internal scratch']
  %s0 = inlined_call_operand.hbm [shape: s32[8,16], index: 0, kind: input, shape index: {}]
  %s1 = inlined_call_operand.hbm [shape: f32[8,16], index: 1, kind: input, shape index: {}]
  %s2 = inlined_call_operand.hbm [shape: f32[32,64], index: 2, kind: input, shape index: {}]
  %s3 = inlined_call_operand.vmem [shape: f32[32,16], index: 3, kind: output, shape index: {}]
  %s4 = sld [smem:[#allocation0]]
  $region34: #{tpu_custom_call.1} parent=0
    _
  %s6 = ssub.s32 1, %s4
  %s7 = scalar_select 0, %s6, %s4
  $region1: #{tpu_custom_call.1} parent=0
    #allocation2 [shape = 'u8[4096]{0}', space=vmem, size = 0x1000, scoped, tag = 'input window, operand 0, single buffered']
    #allocation3 [shape = 's32[1]{0}', space=sflag, size = 0x4, scoped, tag = 'scoped memory for tpu_custom_call.1']
    #allocation4 [shape = 'u8[4096]{0}', space=vmem, size = 0x1000, scoped, tag = 'input window, operand 1, single buffered']
    #allocation5 [shape = 's32[1]{0}', space=sflag, size = 0x4, scoped, tag = 'scoped memory for tpu_custom_call.1']
    #allocation6 [shape = 'u8[16384]{0}', space=vmem, size = 0x4000, scoped, tag = 'input window, operand 2, single buffered']
    %8 = vsyncpa [#allocation3], 0
    %9 = vsyncpa [#allocation5], 0
    // Predicated region
    $region2: #{tpu_custom_call.1} parent=1 // pred_check
      _
    $region3: #{tpu_custom_call.1} parent=1 // pred_check_branch
      %11 = sbr.rel (0) target = $region5
    $region4: #{tpu_custom_call.1} parent=1 // pred_region
      %s13 = ssub.s32 128, 128
      %14 = vsyncadd [#allocation3], %s13
      %s16 = sshll.u32 [#allocation2], 4
      %s17 = int_to_ptr.vmem [resolvable:$true] %s16
      %19 = dma.hbm_to_vmem [thread:$0]  %s0, 128, %s17, [#allocation3]
    $region5: #{tpu_custom_call.1} parent=1 // pred_fallthru
      _
    // Predicated region
    $region6: #{tpu_custom_call.1} parent=1 // pred_check
      _
    $region7: #{tpu_custom_call.1} parent=1 // pred_check_branch
      %21 = sbr.rel (0) target = $region9
    $region8: #{tpu_custom_call.1} parent=1 // pred_region
      %s23 = ssub.s32 128, 128
      %24 = vsyncadd [#allocation5], %s23
      %s26 = sshll.u32 [#allocation4], 4
      %s27 = int_to_ptr.vmem [resolvable:$true] %s26
      %29 = dma.hbm_to_vmem [thread:$0]  %s1, 128, %s27, [#allocation5]
    $region9: #{tpu_custom_call.1} parent=1 // pred_fallthru
      _
    // Predicated region
    $region10: #{tpu_custom_call.1} parent=1 // pred_check
      _
    $region11: #{tpu_custom_call.1} parent=1 // pred_check_branch
      %31 = sbr.rel (0) target = $region13
    $region12: #{tpu_custom_call.1} parent=1 // pred_region
      %s33 = ssub.s32 512, 512
      %34 = vsyncadd [#allocation5], %s33
      %s35 = sshll.u32 [#allocation6], 4
      %s36 = int_to_ptr.vmem [resolvable:$true] %s35
      %41 = dma.hbm_to_vmem [thread:$0]  %s2, 512, %s36, [#allocation5], 128, 128, 8
    $region13: #{tpu_custom_call.1} parent=1 // pred_fallthru
      _
    // Predicated region
    $region14: #{tpu_custom_call.1} parent=1 // pred_check
      _
    $region15: #{tpu_custom_call.1} parent=1 // pred_check_branch
      %43 = sbr.rel (0) target = $region17
    $region16: #{tpu_custom_call.1} parent=1 // pred_region
      %44 = dma.done [#allocation3], 128
    $region17: #{tpu_custom_call.1} parent=1 // pred_fallthru
      _
    // Predicated region
    $region18: #{tpu_custom_call.1} parent=1 // pred_check
      _
    $region19: #{tpu_custom_call.1} parent=1 // pred_check_branch
      %46 = sbr.rel (0) target = $region21
    $region20: #{tpu_custom_call.1} parent=1 // pred_region
      %47 = dma.done [#allocation5], 128
    $region21: #{tpu_custom_call.1} parent=1 // pred_fallthru
      _
    // Predicated region
    $region22: #{tpu_custom_call.1} parent=1 // pred_check
      _
    $region23: #{tpu_custom_call.1} parent=1 // pred_check_branch
      %49 = sbr.rel (0) target = $region25
    $region24: #{tpu_custom_call.1} parent=1 // pred_region
      %50 = dma.done [#allocation5], 512
    $region25: #{tpu_custom_call.1} parent=1 // pred_fallthru
      _
    %v51 = vld [vmem:[#allocation2] sm:$0xff]
    %v52 = vld [vmem:[#allocation4] sm:$0xff]
    %vm53 = vcmp.ne.s32.totalorder %v51, 0
    %v54 = vsel %vm53, %v52, 0.0
    %v55 = vlaneseq
    %v56 = vshrl.u32 %v55, 7
    %v57 = vadd.s32 %v56, 8
    %v58 = vadd.s32 %v56, 16
    %v59 = vadd.s32 %v56, 24
    %v60 = vadd.s32 %v56, 32
    %v61 = vadd.s32 %v56, 40
    %v62 = vadd.s32 %v56, 48
    %v63 = vadd.s32 %v56, 56
    %v64 = vlaneseq
    %v65 = vshrl.u32 %v64, 7
    %v66 = vsub.s32 0, %v65
    %v67 = vrot.slane %v51, %v66
    %vm68 = vcmp.eq.s32.totalorder %v56, %v67
    %vm69 = vcmp.eq.s32.totalorder %v57, %v67
    %vm70 = vcmp.eq.s32.totalorder %v58, %v67
    %vm71 = vcmp.eq.s32.totalorder %v59, %v67
    %vm72 = vcmp.eq.s32.totalorder %v60, %v67
    %vm73 = vcmp.eq.s32.totalorder %v61, %v67
    %vm74 = vcmp.eq.s32.totalorder %v62, %v67
    %vm75 = vcmp.eq.s32.totalorder %v63, %v67
    %v76 = vlaneseq
    %v77 = vshrl.u32 %v76, 7
    %v78 = vsub.s32 0, %v77
    %v79 = vrot.slane %v54, %v78
    %v80 = vsel %vm68, %v79, 0.0
    %v81 = vsel %vm69, %v79, 0.0
    %v82 = vsel %vm70, %v79, 0.0
    %v83 = vsel %vm71, %v79, 0.0
    %v84 = vsel %vm72, %v79, 0.0
    %v85 = vsel %vm73, %v79, 0.0
    %v86 = vsel %vm74, %v79, 0.0
    %v87 = vsel %vm75, %v79, 0.0
    %v88 = vadd.f32 %v80, 0.0
    %v89 = vadd.f32 %v81, 0.0
    %v90 = vadd.f32 %v82, 0.0
    %v91 = vadd.f32 %v83, 0.0
    %v92 = vadd.f32 %v84, 0.0
    %v93 = vadd.f32 %v85, 0.0
    %v94 = vadd.f32 %v86, 0.0
    %v95 = vadd.f32 %v87, 0.0
    %v96 = vlaneseq
    %v97 = vshrl.u32 %v96, 7
    %v98 = vsub.s32 1, %v97
    %v99 = vrot.slane %v51, %v98
    %vm100 = vcmp.eq.s32.totalorder %v56, %v99
    %vm101 = vcmp.eq.s32.totalorder %v57, %v99
    %vm102 = vcmp.eq.s32.totalorder %v58, %v99
    %vm103 = vcmp.eq.s32.totalorder %v59, %v99
    %vm104 = vcmp.eq.s32.totalorder %v60, %v99
    %vm105 = vcmp.eq.s32.totalorder %v61, %v99
    %vm106 = vcmp.eq.s32.totalorder %v62, %v99
    %vm107 = vcmp.eq.s32.totalorder %v63, %v99
    %v108 = vlaneseq
    %v109 = vshrl.u32 %v108, 7
    %v110 = vsub.s32 1, %v109
    %v111 = vrot.slane %v54, %v110
    %v112 = vsel %vm100, %v111, 0.0
    %v113 = vsel %vm101, %v111, 0.0
    %v114 = vsel %vm102, %v111, 0.0
    %v115 = vsel %vm103, %v111, 0.0
    %v116 = vsel %vm104, %v111, 0.0
    %v117 = vsel %vm105, %v111, 0.0
    %v118 = vsel %vm106, %v111, 0.0
    %v119 = vsel %vm107, %v111, 0.0
    %v120 = vadd.f32 %v88, %v112
    %v121 = vadd.f32 %v89, %v113
    %v122 = vadd.f32 %v90, %v114
    %v123 = vadd.f32 %v91, %v115
    %v124 = vadd.f32 %v92, %v116
    %v125 = vadd.f32 %v93, %v117
    %v126 = vadd.f32 %v94, %v118
    %v127 = vadd.f32 %v95, %v119
    %v128 = vlaneseq
    %v129 = vshrl.u32 %v128, 7
    %v130 = vsub.s32 2, %v129
    %v131 = vrot.slane %v51, %v130
    %vm132 = vcmp.eq.s32.totalorder %v56, %v131
    %vm133 = vcmp.eq.s32.totalorder %v57, %v131
    %vm134 = vcmp.eq.s32.totalorder %v58, %v131
    %vm135 = vcmp.eq.s32.totalorder %v59, %v131
    %vm136 = vcmp.eq.s32.totalorder %v60, %v131
    %vm137 = vcmp.eq.s32.totalorder %v61, %v131
    %vm138 = vcmp.eq.s32.totalorder %v62, %v131
    %vm139 = vcmp.eq.s32.totalorder %v63, %v131
    %v140 = vlaneseq
    %v141 = vshrl.u32 %v140, 7
    %v142 = vsub.s32 2, %v141
    %v143 = vrot.slane %v54, %v142
    %v144 = vsel %vm132, %v143, 0.0
    %v145 = vsel %vm133, %v143, 0.0
    %v146 = vsel %vm134, %v143, 0.0
    %v147 = vsel %vm135, %v143, 0.0
    %v148 = vsel %vm136, %v143, 0.0
    %v149 = vsel %vm137, %v143, 0.0
    %v150 = vsel %vm138, %v143, 0.0
    %v151 = vsel %vm139, %v143, 0.0
    %v152 = vadd.f32 %v120, %v144
    %v153 = vadd.f32 %v121, %v145
    %v154 = vadd.f32 %v122, %v146
    %v155 = vadd.f32 %v123, %v147
    %v156 = vadd.f32 %v124, %v148
    %v157 = vadd.f32 %v125, %v149
    %v158 = vadd.f32 %v126, %v150
    %v159 = vadd.f32 %v127, %v151
    %v160 = vlaneseq
    %v161 = vshrl.u32 %v160, 7
    %v162 = vsub.s32 3, %v161
    %v163 = vrot.slane %v51, %v162
    %vm164 = vcmp.eq.s32.totalorder %v56, %v163
    %vm165 = vcmp.eq.s32.totalorder %v57, %v163
    %vm166 = vcmp.eq.s32.totalorder %v58, %v163
    %vm167 = vcmp.eq.s32.totalorder %v59, %v163
    %vm168 = vcmp.eq.s32.totalorder %v60, %v163
    %vm169 = vcmp.eq.s32.totalorder %v61, %v163
    %vm170 = vcmp.eq.s32.totalorder %v62, %v163
    %vm171 = vcmp.eq.s32.totalorder %v63, %v163
    %v172 = vlaneseq
    %v173 = vshrl.u32 %v172, 7
    %v174 = vsub.s32 3, %v173
    %v175 = vrot.slane %v54, %v174
    %v176 = vsel %vm164, %v175, 0.0
    %v177 = vsel %vm165, %v175, 0.0
    %v178 = vsel %vm166, %v175, 0.0
    %v179 = vsel %vm167, %v175, 0.0
    %v180 = vsel %vm168, %v175, 0.0
    %v181 = vsel %vm169, %v175, 0.0
    %v182 = vsel %vm170, %v175, 0.0
    %v183 = vsel %vm171, %v175, 0.0
    %v184 = vadd.f32 %v152, %v176
    %v185 = vadd.f32 %v153, %v177
    %v186 = vadd.f32 %v154, %v178
    %v187 = vadd.f32 %v155, %v179
    %v188 = vadd.f32 %v156, %v180
    %v189 = vadd.f32 %v157, %v181
    %v190 = vadd.f32 %v158, %v182
    %v191 = vadd.f32 %v159, %v183
    %v192 = vlaneseq
    %v193 = vshrl.u32 %v192, 7
    %v194 = vsub.s32 4, %v193
    %v195 = vrot.slane %v51, %v194
    %vm196 = vcmp.eq.s32.totalorder %v56, %v195
    %vm197 = vcmp.eq.s32.totalorder %v57, %v195
    %vm198 = vcmp.eq.s32.totalorder %v58, %v195
    %vm199 = vcmp.eq.s32.totalorder %v59, %v195
    %vm200 = vcmp.eq.s32.totalorder %v60, %v195
    %vm201 = vcmp.eq.s32.totalorder %v61, %v195
    %vm202 = vcmp.eq.s32.totalorder %v62, %v195
    %vm203 = vcmp.eq.s32.totalorder %v63, %v195
    %v204 = vlaneseq
    %v205 = vshrl.u32 %v204, 7
    %v206 = vsub.s32 4, %v205
    %v207 = vrot.slane %v54, %v206
    %v208 = vsel %vm196, %v207, 0.0
    %v209 = vsel %vm197, %v207, 0.0
    %v210 = vsel %vm198, %v207, 0.0
    %v211 = vsel %vm199, %v207, 0.0
    %v212 = vsel %vm200, %v207, 0.0
    %v213 = vsel %vm201, %v207, 0.0
    %v214 = vsel %vm202, %v207, 0.0
    %v215 = vsel %vm203, %v207, 0.0
    %v216 = vadd.f32 %v184, %v208
    %v217 = vadd.f32 %v185, %v209
    %v218 = vadd.f32 %v186, %v210
    %v219 = vadd.f32 %v187, %v211
    %v220 = vadd.f32 %v188, %v212
    %v221 = vadd.f32 %v189, %v213
    %v222 = vadd.f32 %v190, %v214
    %v223 = vadd.f32 %v191, %v215
    %v224 = vlaneseq
    %v225 = vshrl.u32 %v224, 7
    %v226 = vsub.s32 5, %v225
    %v227 = vrot.slane %v51, %v226
    %vm228 = vcmp.eq.s32.totalorder %v56, %v227
    %vm229 = vcmp.eq.s32.totalorder %v57, %v227
    %vm230 = vcmp.eq.s32.totalorder %v58, %v227
    %vm231 = vcmp.eq.s32.totalorder %v59, %v227
    %vm232 = vcmp.eq.s32.totalorder %v60, %v227
    %vm233 = vcmp.eq.s32.totalorder %v61, %v227
    %vm234 = vcmp.eq.s32.totalorder %v62, %v227
    %vm235 = vcmp.eq.s32.totalorder %v63, %v227
    %v236 = vlaneseq
    %v237 = vshrl.u32 %v236, 7
    %v238 = vsub.s32 5, %v237
    %v239 = vrot.slane %v54, %v238
    %v240 = vsel %vm228, %v239, 0.0
    %v241 = vsel %vm229, %v239, 0.0
    %v242 = vsel %vm230, %v239, 0.0
    %v243 = vsel %vm231, %v239, 0.0
    %v244 = vsel %vm232, %v239, 0.0
    %v245 = vsel %vm233, %v239, 0.0
    %v246 = vsel %vm234, %v239, 0.0
    %v247 = vsel %vm235, %v239, 0.0
    %v248 = vadd.f32 %v216, %v240
    %v249 = vadd.f32 %v217, %v241
    %v250 = vadd.f32 %v218, %v242
    %v251 = vadd.f32 %v219, %v243
    %v252 = vadd.f32 %v220, %v244
    %v253 = vadd.f32 %v221, %v245
    %v254 = vadd.f32 %v222, %v246
    %v255 = vadd.f32 %v223, %v247
    %v256 = vlaneseq
    %v257 = vshrl.u32 %v256, 7
    %v258 = vsub.s32 6, %v257
    %v259 = vrot.slane %v51, %v258
    %vm260 = vcmp.eq.s32.totalorder %v56, %v259
    %vm261 = vcmp.eq.s32.totalorder %v57, %v259
    %vm262 = vcmp.eq.s32.totalorder %v58, %v259
    %vm263 = vcmp.eq.s32.totalorder %v59, %v259
    %vm264 = vcmp.eq.s32.totalorder %v60, %v259
    %vm265 = vcmp.eq.s32.totalorder %v61, %v259
    %vm266 = vcmp.eq.s32.totalorder %v62, %v259
    %vm267 = vcmp.eq.s32.totalorder %v63, %v259
    %v268 = vlaneseq
    %v269 = vshrl.u32 %v268, 7
    %v270 = vsub.s32 6, %v269
    %v271 = vrot.slane %v54, %v270
    %v272 = vsel %vm260, %v271, 0.0
    %v273 = vsel %vm261, %v271, 0.0
    %v274 = vsel %vm262, %v271, 0.0
    %v275 = vsel %vm263, %v271, 0.0
    %v276 = vsel %vm264, %v271, 0.0
    %v277 = vsel %vm265, %v271, 0.0
    %v278 = vsel %vm266, %v271, 0.0
    %v279 = vsel %vm267, %v271, 0.0
    %v280 = vadd.f32 %v248, %v272
    %v281 = vadd.f32 %v249, %v273
    %v282 = vadd.f32 %v250, %v274
    %v283 = vadd.f32 %v251, %v275
    %v284 = vadd.f32 %v252, %v276
    %v285 = vadd.f32 %v253, %v277
    %v286 = vadd.f32 %v254, %v278
    %v287 = vadd.f32 %v255, %v279
    %v288 = vlaneseq
    %v289 = vshrl.u32 %v288, 7
    %v290 = vsub.s32 7, %v289
    %v291 = vrot.slane %v51, %v290
    %vm292 = vcmp.eq.s32.totalorder %v56, %v291
    %vm293 = vcmp.eq.s32.totalorder %v57, %v291
    %vm294 = vcmp.eq.s32.totalorder %v58, %v291
    %vm295 = vcmp.eq.s32.totalorder %v59, %v291
    %vm296 = vcmp.eq.s32.totalorder %v60, %v291
    %vm297 = vcmp.eq.s32.totalorder %v61, %v291
    %vm298 = vcmp.eq.s32.totalorder %v62, %v291
    %vm299 = vcmp.eq.s32.totalorder %v63, %v291
    %v300 = vlaneseq
    %v301 = vshrl.u32 %v300, 7
    %v302 = vsub.s32 7, %v301
    %v303 = vrot.slane %v54, %v302
    %v304 = vsel %vm292, %v303, 0.0
    %v305 = vsel %vm293, %v303, 0.0
    %v306 = vsel %vm294, %v303, 0.0
    %v307 = vsel %vm295, %v303, 0.0
    %v308 = vsel %vm296, %v303, 0.0
    %v309 = vsel %vm297, %v303, 0.0
    %v310 = vsel %vm298, %v303, 0.0
    %v311 = vsel %vm299, %v303, 0.0
    %v312 = vadd.f32 %v280, %v304
    %v313 = vadd.f32 %v281, %v305
    %v314 = vadd.f32 %v282, %v306
    %v315 = vadd.f32 %v283, %v307
    %v316 = vadd.f32 %v284, %v308
    %v317 = vadd.f32 %v285, %v309
    %v318 = vadd.f32 %v286, %v310
    %v319 = vadd.f32 %v287, %v311
    %v320 = vld [vmem:[#allocation6] sm:$0xff]
    %v321 = vld [vmem:[#allocation6 + $0x8] sm:$0xff]
    %v322 = vld [vmem:[#allocation6 + $0x10] sm:$0xff]
    %v323 = vld [vmem:[#allocation6 + $0x18] sm:$0xff]
    %vm324 = vcmask 523264
    %v326 = vsel %vm324, %v320, 0
    %v329 = vsel %vm324, %v321, 0
    %v332 = vsel %vm324, %v322, 0
    %v335 = vsel %vm324, %v323, 0
    %337 = vmatprep.subr.mxu0 0.0
    %338 = vmatpush1.msra.mxu0 0.0
    %339 = vmatprep.subr.mxu0 0.0
    %340 = vmatpush1.msra.mxu0 0.0
    %341 = vmatprep.subr.mxu0 0.0
    %342 = vmatpush1.msra.mxu0 0.0
    %343 = vmatprep.subr.mxu0 0.0
    %344 = vmatpush1.msra.mxu0 0.0
    %345 = vmatprep.subr.mxu0 0.0
    %346 = vmatpush1.msra.mxu0 0.0
    %347 = vmatprep.subr.mxu0 0.0
    %348 = vmatpush1.msra.mxu0 0.0
    %349 = vmatprep.subr.mxu0 0.0
    %350 = vmatpush1.msra.mxu0 0.0
    %351 = vmatprep.subr.mxu0 0.0
    %352 = vmatpush1.msra.mxu0 0.0
    %353 = vmatprep.subr.mxu0 0.0
    %354 = vmatpush1.msra.mxu0 %v319
    %355 = vmatprep.subr.mxu0 0.0
    %356 = vmatpush1.msra.mxu0 %v318
    %357 = vmatprep.subr.mxu0 0.0
    %358 = vmatpush1.msra.mxu0 %v317
    %359 = vmatprep.subr.mxu0 0.0
    %360 = vmatpush1.msra.mxu0 %v316
    %361 = vmatprep.subr.mxu0 0.0
    %362 = vmatpush1.msra.mxu0 %v315
    %363 = vmatprep.subr.mxu0 0.0
    %364 = vmatpush1.msra.mxu0 %v314
    %365 = vmatprep.subr.mxu0 0.0
    %366 = vmatpush1.msra.mxu0 %v313
    %367 = vmatprep.subr.mxu0 0.0
    %368 = vmatpush1.msra.mxu0 %v312
    %369 = vmatprep.subr.mxu0 0.0
    %370 = vmatpush2.msra.mxu0 0.0
    %371 = vmatprep.subr.mxu0 0.0
    %372 = vmatpush2.msra.mxu0 0.0
    %373 = vmatprep.subr.mxu0 0.0
    %374 = vmatpush2.msra.mxu0 0.0
    %375 = vmatprep.subr.mxu0 0.0
    %376 = vmatpush2.msra.mxu0 0.0
    %377 = vmatprep.subr.mxu0 0.0
    %378 = vmatpush2.msra.mxu0 0.0
    %379 = vmatprep.subr.mxu0 0.0
    %380 = vmatpush2.msra.mxu0 0.0
    %381 = vmatprep.subr.mxu0 0.0
    %382 = vmatpush2.msra.mxu0 0.0
    %383 = vmatprep.subr.mxu0 0.0
    %384 = vmatpush2.msra.mxu0 0.0
    %385 = vmatprep.subr.mxu0 0.0
    %386 = vmatpush2.msra.mxu0 0.0
    %387 = vmatprep.subr.mxu0 0.0
    %388 = vmatpush2.msra.mxu0 0.0
    %389 = vmatprep.subr.mxu0 0.0
    %390 = vmatpush2.msra.mxu0 0.0
    %391 = vmatprep.subr.mxu0 0.0
    %392 = vmatpush2.msra.mxu0 0.0
    %393 = vmatprep.subr.mxu0 0.0
    %394 = vmatpush2.msra.mxu0 0.0
    %395 = vmatprep.subr.mxu0 0.0
    %396 = vmatpush2.msra.mxu0 0.0
    %397 = vmatprep.subr.mxu0 0.0
    %398 = vmatpush2.msra.mxu0 0.0
    %399 = vmatprep.subr.mxu0 0.0
    %400 = vmatpush2.msra.mxu0 0.0
    %401 = vmatprep.mubr.f32.mxu0 0.0
    %402 = vmatmul.mubr.f32.gmra.mxu0 %v326
    %v403 = vpop.f32.mrf.mxu0
    %v404 = vadd.f32 0.0, %v403
    %v405 = vpop.f32.mrf.mxu0
    %406 = vmatprep.mubr.f32.mxu0 0.0
    %407 = vmatmul.mubr.f32.gmra.mxu0 %v329
    %v408 = vpop.f32.mrf.mxu0
    %v409 = vadd.f32 0.0, %v408
    %v410 = vpop.f32.mrf.mxu0
    %411 = vmatprep.mubr.f32.mxu0 0.0
    %412 = vmatmul.mubr.f32.gmra.mxu0 %v332
    %v413 = vpop.f32.mrf.mxu0
    %v414 = vadd.f32 0.0, %v413
    %v415 = vpop.f32.mrf.mxu0
    %416 = vmatprep.mubr.f32.mxu0 0.0
    %417 = vmatmul.mubr.f32.gmra.mxu0 %v335
    %v418 = vpop.f32.mrf.mxu0
    %v419 = vadd.f32 0.0, %v418
    %v420 = vpop.f32.mrf.mxu0
    %421 = vdwg.mxu0
    %vm422 = vcmask 130048
    %423 = vst.msk [vmem:[%s3] sm:$0xff] %vm422, %v404
    %424 = vst.msk [vmem:[%s3 + $0x8] sm:$0xff] %vm422, %v409
    %425 = vst.msk [vmem:[%s3 + $0x10] sm:$0xff] %vm422, %v414
    %426 = vst.msk [vmem:[%s3 + $0x18] sm:$0xff] %vm422, %v419
    // Predicated region
    $region26: #{tpu_custom_call.1} parent=1 // pred_check
      _
    $region27: #{tpu_custom_call.1} parent=1 // pred_check_branch
      %428 = sbr.rel (0) target = $region29
    $region28: #{tpu_custom_call.1} parent=1 // pred_region
      _
    $region29: #{tpu_custom_call.1} parent=1 // pred_fallthru
      _
    // Predicated region
    $region30: #{tpu_custom_call.1} parent=1 // pred_check
      _
    $region31: #{tpu_custom_call.1} parent=1 // pred_check_branch
      %430 = sbr.rel (0) target = $region33
    $region32: #{tpu_custom_call.1} parent=1 // pred_region
      _
    $region33: #{tpu_custom_call.1} parent=1 // pred_fallthru
      _
    %431 = vsyncpa [#allocation3], 1
    %432 = vsyncpa [#allocation5], 1

</llo_original>
